<compile_context>
chip_gen: v5e
topology: v5e:2x2
jax: 0.10.0
libtpu: 0.0.40
codegen_flags: <defaults>
</compile_context>

<pallas_src>
import functools

import jax
import jax.numpy as jnp
from jax import lax
from jax.experimental import pallas as pl
from jax.experimental.pallas import tpu as pltpu


def _focal_loss_kernel(logits_ref, target_ref, out_ref, acc_ref, *,
                       gamma, n, tile_n):
    # logits_ref: (tile_n, C) float, target_ref: (tile_n, 1) i32,
    # out_ref: (1, 1) f32, acc_ref: (1, 1) f32 persistent scratch.
    i = pl.program_id(0)

    @pl.when(i == 0)
    def _init():
        acc_ref[...] = jnp.zeros_like(acc_ref)

    x = logits_ref[...].astype(jnp.float32)                      # (tile_n, C)
    t = target_ref[...]                                          # (tile_n, 1)

    # Mask rows of the (possibly partial) last tile so padded/garbage rows
    # contribute exactly zero to the mean.
    row = jax.lax.broadcasted_iota(jnp.int32, (x.shape[0], 1), 0) + i * tile_n
    valid = row < n                                              # (tile_n, 1)
    x = jnp.where(valid, x, 0.0)
    t = jnp.where(valid, t, 0)

    # Numerically stable softmax pieces; exp(x - m) is reused for both the
    # denominator and the target-class probability (saves one EUP exp per row).
    m = jnp.max(x, axis=-1, keepdims=True)                       # (tile_n, 1)
    e = jnp.exp(x - m)                                           # (tile_n, C)
    s = jnp.sum(e, axis=-1, keepdims=True)                       # (tile_n, 1)

    cls = jax.lax.broadcasted_iota(jnp.int32, x.shape, 1)        # (tile_n, C)
    onehot = cls == t                                            # broadcast (N,1)
    x_t = jnp.sum(jnp.where(onehot, x, 0.0), axis=-1, keepdims=True)
    e_t = jnp.sum(jnp.where(onehot, e, 0.0), axis=-1, keepdims=True)

    nll = jnp.log(s) + m - x_t          # F.cross_entropy(..., reduction='none')
    p_t = e_t / s                       # == exp(-nll), bounded in [0, 1]
    w = jnp.maximum(1.0 - p_t, 0.0)     # clamp: no NaN from rounding (p_t > 1)

    if float(gamma) == int(gamma) and int(gamma) >= 0:
        # Integer gamma (the common case, e.g. 2): a plain VPU multiply chain.
        focal_w = lax.integer_pow(w, int(gamma))
    else:
        # Float gamma: exp(gamma*log(w)) with a clamp; 0**gamma -> 0.
        focal_w = jnp.where(
            w > 0.0,
            jnp.exp(float(gamma) *
                    jnp.log(jnp.maximum(w, jnp.finfo(jnp.float32).tiny))),
            0.0)

    loss = jnp.where(valid, focal_w * nll, 0.0)                  # (tile_n, 1)

    acc_ref[...] += jnp.sum(loss, axis=0, keepdims=True)

    @pl.when(i == pl.num_programs(0) - 1)
    def _finalize():
        out_ref[...] = acc_ref[...] * (1.0 / float(n))


def _choose_tile_n(n, c, itemsize):
    # ~4 MiB per logits tile buffer -> double-buffered inputs stay well under the
    # scoped-VMEM limit on every generation (v5e 16 MiB default, v7x 64 MiB phys),
    # while tiles remain large enough to amortize the ~0.35 us per-grid-step cost.
    budget = 4 * 1024 * 1024
    rows = budget // max(c * itemsize, 1)
    rows = max(8, min(int(rows), 1024))
    rows = (rows // 8) * 8          # sublane alignment
    if rows >= n:
        return n                    # single tile: block == full array dims is legal
    return rows


def focal_loss(logits, targets, gamma, *, tile_n=None):
    """logits: (N, C) float, targets: (N,) int -> scalar f32 focal loss (mean)."""
    n, c = logits.shape
    itemsize = jnp.dtype(logits.dtype).itemsize
    if tile_n is None:
        tile_n = _choose_tile_n(n, c, itemsize)
    tile_n = min(int(tile_n), n)
    if tile_n < n and tile_n % 8 != 0:
        tile_n = max(8, (tile_n // 8) * 8)

    num_tiles = pl.cdiv(n, tile_n)
    t2 = targets.reshape(n, 1).astype(jnp.int32)

    # Explicit scoped-VMEM limit sized from the chosen tile (safe on v5e/v6e/v7x).
    tile_bytes = tile_n * c * itemsize
    vmem_limit = int(min(max(6 * tile_bytes + (2 << 20), 16 << 20), 48 << 20))

    cost = pl.CostEstimate(
        flops=int(8 * n * c),
        transcendentals=int(n * c + 4 * n),
        bytes_accessed=int(n * c * itemsize + n * 4 + 4),
    )

    # TODO(synk): for vocab-scale C, add an inner grid axis over classes with an
    #             online (flash-style) logsumexp so each C-tile still fits VMEM.
    # TODO(synk): on v7x, split the batch range across the 2 TensorCores with
    #             per-core partial sums (summed in the wrapper) for ~2x bandwidth.
    out = pl.pallas_call(
        functools.partial(_focal_loss_kernel, gamma=gamma, n=n, tile_n=tile_n),
        out_shape=jax.ShapeDtypeStruct((1, 1), jnp.float32),
        grid_spec=pltpu.PrefetchScalarGridSpec(
            num_scalar_prefetch=0,
            grid=(num_tiles,),
            in_specs=[
                pl.BlockSpec((tile_n, c), lambda i: (i, 0)),
                pl.BlockSpec((tile_n, 1), lambda i: (i, 0)),
            ],
            out_specs=pl.BlockSpec((1, 1), lambda i: (0, 0)),
            scratch_shapes=[pltpu.VMEM((1, 1), jnp.float32)],
        ),
        compiler_params=pltpu.CompilerParams(
            dimension_semantics=("arbitrary",),   # accumulation axis
            vmem_limit_bytes=vmem_limit,
        ),
        cost_estimate=cost,
    )(logits, t2)
    return out[0, 0]


def focal_loss_ref(logits, targets, gamma):
    """Pure-JAX reference mirroring the PyTorch module."""
    x = logits.astype(jnp.float32)
    lse = jax.nn.logsumexp(x, axis=-1)
    x_t = jnp.take_along_axis(x, targets[:, None].astype(jnp.int32), axis=-1)[:, 0]
    log_pt = lse - x_t                      # NLL, reduction='none'
    p_t = jnp.exp(-log_pt)
    loss = (1.0 - p_t) ** gamma * log_pt
    return jnp.mean(loss)


if __name__ == "__main__":
    gamma = 2.0
    key = jax.random.PRNGKey(0)

    # Case 1: small single-tile path (N=8, C=32).
    k1, k2, k3, k4 = jax.random.split(key, 4)
    N, C = 8, 32
    logits = jax.random.normal(k1, (N, C), dtype=jnp.float32)
    targets = jax.random.randint(k2, (N,), 0, C, dtype=jnp.int32)

    out = jax.block_until_ready(focal_loss(logits, targets, gamma))
    ref = focal_loss_ref(logits, targets, gamma)
    assert jnp.allclose(out, ref, rtol=1e-5, atol=1e-5), (out, ref)

    # Case 2: exercise the grid + accumulator + partial-tile masking path
    # (N=20 with tile_n=8 -> 3 grid steps, last tile half-empty).
    N2, C2 = 20, 32
    logits2 = jax.random.normal(k3, (N2, C2), dtype=jnp.float32)
    targets2 = jax.random.randint(k4, (N2,), 0, C2, dtype=jnp.int32)

    out2 = jax.block_until_ready(focal_loss(logits2, targets2, gamma, tile_n=8))
    ref2 = focal_loss_ref(logits2, targets2, gamma)
    assert jnp.allclose(out2, ref2, rtol=1e-5, atol=1e-5), (out2, ref2)

    print("KERNEL_OK")
</pallas_src>

<mosaic_0001>
module attributes {stable_mosaic.version = 11 : i64} {
  func.func @_focal_loss_kernel(%arg0: i32, %arg1: memref<8x32xf32, #tpu.memory_space<vmem>>, %arg2: memref<8x1xi32, #tpu.memory_space<vmem>>, %arg3: memref<1x1xf32, #tpu.memory_space<vmem>>, %arg4: memref<1x1xf32, #tpu.memory_space<vmem>>) attributes {dimension_semantics = [#tpu.dimension_semantics<arbitrary>], iteration_bounds = array<i64: 1>, scalar_prefetch = 0 : i64, scratch_operands = 1 : i64, tpu.core_type = #tpu.core_type<tc>, window_params = [{transform_indices = @transform_0, window_bounds = array<i64: 8, 32>}, {transform_indices = @transform_1, window_bounds = array<i64: 8, 1>}, {pipeline_mode = #tpu.pipeline_mode<synchronous>, transform_indices = @transform_2, window_bounds = array<i64: 1, 1>}]} {
    %c0_i32 = arith.constant 0 : i32
    %0 = arith.cmpi eq, %arg0, %c0_i32 : i32
    %1 = arith.extui %0 : i1 to i32
    %c0_i32_0 = arith.constant 0 : i32
    %2 = arith.cmpi ne, %1, %c0_i32_0 : i32
    scf.if %2 {
      %cst_22 = arith.constant 0.000000e+00 : f32
      %55 = vector.broadcast %cst_22 : f32 to vector<1x1xf32>
      %c0_23 = arith.constant 0 : index
      %c0_24 = arith.constant 0 : index
      %56 = vector.load %arg4[%c0_23, %c0_24] : memref<1x1xf32, #tpu.memory_space<vmem>>, vector<1x1xf32>
      tpu.vector_store %arg4[%c0_23, %c0_24], %55 {strides = array<i32>} : memref<1x1xf32, #tpu.memory_space<vmem>>, vector<1x1xf32>,
    } else {
    }
    %c0 = arith.constant 0 : index
    %c0_1 = arith.constant 0 : index
    %3 = vector.load %arg1[%c0, %c0_1] : memref<8x32xf32, #tpu.memory_space<vmem>>, vector<8x32xf32>
    %c0_2 = arith.constant 0 : index
    %c0_3 = arith.constant 0 : index
    %4 = vector.load %arg2[%c0_2, %c0_3] : memref<8x1xi32, #tpu.memory_space<vmem>>, vector<8x1xi32>
    %5 = tpu.iota {dimensions = array<i32: 0>} : vector<8x1xi32>
    %c8_i32 = arith.constant 8 : i32
    %6 = arith.muli %arg0, %c8_i32 : i32
    %7 = vector.broadcast %6 : i32 to vector<8x1xi32>
    %8 = arith.addi %5, %7 : vector<8x1xi32>
    %c8_i32_4 = arith.constant 8 : i32
    %9 = vector.broadcast %c8_i32_4 : i32 to vector<8x1xi32>
    %10 = arith.cmpi slt, %8, %9 : vector<8x1xi32>
    %cst = arith.constant 0.000000e+00 : f32
    %11 = vector.shape_cast %10 : vector<8x1xi1> to vector<8x1xi1>
    %12 = vector.broadcast %11 : vector<8x1xi1> to vector<8x32xi1>
    %13 = vector.broadcast %cst : f32 to vector<8x32xf32>
    %14 = arith.select %12, %3, %13 : vector<8x32xi1>, vector<8x32xf32>
    %c0_i32_5 = arith.constant 0 : i32
    %15 = vector.broadcast %c0_i32_5 : i32 to vector<8x1xi32>
    %16 = arith.select %10, %4, %15 : vector<8x1xi1>, vector<8x1xi32>
    %cst_6 = arith.constant dense<0xFF800000> : vector<8xf32>
    %17 = vector.multi_reduction <maximumf>, %14, %cst_6 [1] : vector<8x32xf32> to vector<8xf32>
    %18 = vector.shape_cast %17 : vector<8xf32> to vector<8x1xf32>
    %19 = vector.broadcast %18 : vector<8x1xf32> to vector<8x32xf32>
    %20 = arith.subf %14, %19 : vector<8x32xf32>
    %21 = math.exp %20 : vector<8x32xf32>
    %cst_7 = arith.constant dense<0.000000e+00> : vector<8xf32>
    %22 = vector.multi_reduction <add>, %21, %cst_7 [1] : vector<8x32xf32> to vector<8xf32>
    %23 = vector.shape_cast %22 : vector<8xf32> to vector<8x1xf32>
    %24 = tpu.iota {dimensions = array<i32: 1>} : vector<8x32xi32>
    %25 = vector.broadcast %16 : vector<8x1xi32> to vector<8x32xi32>
    %26 = arith.cmpi eq, %24, %25 : vector<8x32xi32>
    %cst_8 = arith.constant 0.000000e+00 : f32
    %27 = vector.broadcast %cst_8 : f32 to vector<8x32xf32>
    %28 = arith.select %26, %14, %27 : vector<8x32xi1>, vector<8x32xf32>
    %cst_9 = arith.constant dense<0.000000e+00> : vector<8xf32>
    %29 = vector.multi_reduction <add>, %28, %cst_9 [1] : vector<8x32xf32> to vector<8xf32>
    %30 = vector.shape_cast %29 : vector<8xf32> to vector<8x1xf32>
    %cst_10 = arith.constant 0.000000e+00 : f32
    %31 = vector.broadcast %cst_10 : f32 to vector<8x32xf32>
    %32 = arith.select %26, %21, %31 : vector<8x32xi1>, vector<8x32xf32>
    %cst_11 = arith.constant dense<0.000000e+00> : vector<8xf32>
    %33 = vector.multi_reduction <add>, %32, %cst_11 [1] : vector<8x32xf32> to vector<8xf32>
    %34 = vector.shape_cast %33 : vector<8xf32> to vector<8x1xf32>
    %35 = math.log %23 : vector<8x1xf32>
    %36 = arith.addf %35, %18 : vector<8x1xf32>
    %37 = arith.subf %36, %30 : vector<8x1xf32>
    %38 = arith.divf %34, %23 : vector<8x1xf32>
    %cst_12 = arith.constant 1.000000e+00 : f32
    %39 = vector.broadcast %cst_12 : f32 to vector<8x1xf32>
    %40 = arith.subf %39, %38 : vector<8x1xf32>
    %cst_13 = arith.constant 0.000000e+00 : f32
    %41 = vector.broadcast %cst_13 : f32 to vector<8x1xf32>
    %42 = arith.maximumf %40, %41 : vector<8x1xf32>
    %43 = arith.mulf %42, %42 : vector<8x1xf32>
    %44 = arith.mulf %43, %37 : vector<8x1xf32>
    %cst_14 = arith.constant 0.000000e+00 : f32
    %45 = vector.broadcast %cst_14 : f32 to vector<8x1xf32>
    %46 = arith.select %10, %44, %45 : vector<8x1xi1>, vector<8x1xf32>
    %c0_15 = arith.constant 0 : index
    %c0_16 = arith.constant 0 : index
    %47 = vector.load %arg4[%c0_15, %c0_16] : memref<1x1xf32, #tpu.memory_space<vmem>>, vector<1x1xf32>
    %cst_17 = arith.constant dense<0.000000e+00> : vector<1xf32>
    %48 = vector.multi_reduction <add>, %46, %cst_17 [0] : vector<8x1xf32> to vector<1xf32>
    %49 = vector.shape_cast %48 : vector<1xf32> to vector<1x1xf32>
    %50 = arith.addf %47, %49 : vector<1x1xf32>
    %c0_18 = arith.constant 0 : index
    %c0_19 = arith.constant 0 : index
    %51 = vector.load %arg4[%c0_18, %c0_19] : memref<1x1xf32, #tpu.memory_space<vmem>>, vector<1x1xf32>
    tpu.vector_store %arg4[%c0_18, %c0_19], %50 {strides = array<i32>} : memref<1x1xf32, #tpu.memory_space<vmem>>, vector<1x1xf32>,
    %c0_i32_20 = arith.constant 0 : i32
    %52 = arith.cmpi eq, %arg0, %c0_i32_20 : i32
    %53 = arith.extui %52 : i1 to i32
    %c0_i32_21 = arith.constant 0 : i32
    %54 = arith.cmpi ne, %53, %c0_i32_21 : i32
    scf.if %54 {
      %c0_22 = arith.constant 0 : index
      %c0_23 = arith.constant 0 : index
      %55 = vector.load %arg4[%c0_22, %c0_23] : memref<1x1xf32, #tpu.memory_space<vmem>>, vector<1x1xf32>
      %cst_24 = arith.constant 1.250000e-01 : f32
      %56 = vector.broadcast %cst_24 : f32 to vector<1x1xf32>
      %57 = arith.mulf %55, %56 : vector<1x1xf32>
      %c0_25 = arith.constant 0 : index
      %c0_26 = arith.constant 0 : index
      %58 = vector.load %arg3[%c0_25, %c0_26] : memref<1x1xf32, #tpu.memory_space<vmem>>, vector<1x1xf32>
      tpu.vector_store %arg3[%c0_25, %c0_26], %57 {strides = array<i32>} : memref<1x1xf32, #tpu.memory_space<vmem>>, vector<1x1xf32>,
    } else {
    }
    return
  }
  func.func @transform_0(%arg0: i32) -> (i32, i32) {
    %c0_i32 = arith.constant 0 : i32
    %c0_i32_0 = arith.constant 0 : i32
    return %arg0, %c0_i32 : i32, i32
  }
  func.func @transform_1(%arg0: i32) -> (i32, i32) {
    %c0_i32 = arith.constant 0 : i32
    %c0_i32_0 = arith.constant 0 : i32
    return %arg0, %c0_i32 : i32, i32
  }
  func.func @transform_2(%arg0: i32) -> (i32, i32) {
    %c0_i32 = arith.constant 0 : i32
    %c0_i32_0 = arith.constant 0 : i32
    %c0_i32_1 = arith.constant 0 : i32
    return %c0_i32, %c0_i32_0 : i32, i32
  }
}

</mosaic_0001>

<llo_original>
// kernel: tpu_custom_call.1
$region0: #{tpu_custom_call.1}
  #allocation0 [shape = 'u32[]', space=smem, size = 0x4, offset = 0x4, fixed_abs, tag = 'smem constant byte address 0x4 - core index']
  #allocation1 [shape = 'u32[72,128]{1,0:T(1,128)}', space=vmem, size = 0x9000, scoped, tag = 'internal scratch']
  #allocation2 [shape = 'f32[1,1]{1,0:T(1,128)}', space=vmem, size = 0x200, scoped, tag = 'scratch operand']
  %s0 = inlined_call_operand.vmem [shape: f32[8,32], index: 0, kind: input, shape index: {}]
  %s1 = inlined_call_operand.vmem [shape: s32[8,1], index: 1, kind: input, shape index: {}]
  %s2 = inlined_call_operand.hbm [shape: f32[1,1], index: 2, kind: output, shape index: {}]
  %s3 = sld [smem:[#allocation0]]
  $region26: #{tpu_custom_call.1} parent=0
    _
  %s5 = ssub.s32 1, %s3
  %s6 = scalar_select 0, %s5, %s3
  $region1: #{tpu_custom_call.1} parent=0
    #allocation3 [shape = 'u8[512]{0}', space=vmem, size = 0x400, scoped, tag = 'output window, operand 0, single buffered']
    #allocation4 [shape = 's32[1]{0}', space=sflag, size = 0x4, scoped, tag = 'scoped memory for tpu_custom_call.1']
    %7 = vsyncpa [#allocation4], 0
    // Predicated region
    $region2: #{tpu_custom_call.1} parent=1 // pred_check
      _
    $region3: #{tpu_custom_call.1} parent=1 // pred_check_branch
      %9 = sbr.rel (0) target = $region5
    $region4: #{tpu_custom_call.1} parent=1 // pred_region
      _
    $region5: #{tpu_custom_call.1} parent=1 // pred_fallthru
      _
    // Predicated region
    $region6: #{tpu_custom_call.1} parent=1 // pred_check
      _
    $region7: #{tpu_custom_call.1} parent=1 // pred_check_branch
      %11 = sbr.rel (0) target = $region9
    $region8: #{tpu_custom_call.1} parent=1 // pred_region
      _
    $region9: #{tpu_custom_call.1} parent=1 // pred_fallthru
      _
    %p12 = scmp.eq.s32.totalorder 0, 0
    // Predicated region
    $region10: #{tpu_custom_call.1} parent=1 // pred_check
      %p13 = pneg %p12
    $region11: #{tpu_custom_call.1} parent=1 // pred_check_branch
      %15 = sbr.rel (%p13) target = $region13
    $region12: #{tpu_custom_call.1} parent=1 // pred_region
      %vm16 = vcmask 0
      %17 = vst.msk [vmem:[#allocation2] sm:$0x1] %vm16, 0.0
    $region13: #{tpu_custom_call.1} parent=1 // pred_fallthru
      _
    %v18 = vld [vmem:[%s0] sm:$0xff]
    %v19 = vld [vmem:[%s1] sm:$0xff]
    %v20 = vlaneseq
    %v21 = vshrl.u32 %v20, 7
    %s22 = smul.u32 0, 8
    %v23 = vstv %s22
    %v24 = vadd.s32 %v21, %v23
    %vm25 = vcmp.lt.s32.totalorder %v24, 8
    %v26 = vsel %vm25, 1, 0
    %vm27 = vcmp.eq.s32.totalorder %v26, 1
    %v28 = vsel %vm27, %v18, 0.0
    %v29 = vsel %vm25, %v19, 0
    %vm30 = vcmask 261120
    %v31 = vsel %vm30, %v28, -inf
    %32 = vmax.xlane.f32.xlu0 %v31
    %v33 = vpop.xlane.xlu0 %32
    %v34 = vsub.f32 %v28, %v33
    %v35 = vmul.f32 %v34, 1.442695
    %v36 = vpow.pop %v35
    %v37 = vsel %vm30, %v36, 0.0
    %38 = vadd.xlane.f32.xlu0 %v37
    %v39 = vpop.xlane.xlu0 %38
    %v40 = vlaneseq
    %v41 = vand.u32 %v40, 127
    %42 = vset.pattern.permute.xlu0 0
    %43 = vperm.xlu0 %42, %v29
    %v44 = vpop.permute.xlu0 %43
    %vm45 = vcmp.eq.s32.totalorder %v41, %v44
    %v46 = vsel %vm45, %v28, 0.0
    %v47 = vsel %vm30, %v46, 0.0
    %48 = vadd.xlane.f32.xlu0 %v47
    %v49 = vpop.xlane.xlu0 %48
    %v50 = vsel %vm45, %v36, 0.0
    %v51 = vsel %vm30, %v50, 0.0
    %52 = vadd.xlane.f32.xlu0 %v51
    %v53 = vpop.xlane.xlu0 %52
    %v54 = vlog2.pop %v39
    %v55 = vmul.f32 %v54, 0.6931472
    %v56 = vadd.f32 %v55, %v33
    %v57 = vsub.f32 %v56, %v49
    %v58 = vrcp.pop %v39
    %v59 = vmul.f32 %v39, %v58
    %v60 = vsub.f32 1.0, %v59
    %v61 = vmul.f32 %v58, %v60
    %v62 = vadd.f32 %v58, %v61
    %vm63 = vweird.f32 %v39
    %vm64 = vweird.f32 %v58
    %vm65 = vmor %vm63, %vm64
    %v66 = vsel %vm65, %v58, %v62
    %v67 = vand.u32 2147483647, %v39
    %vm68 = vcmp.eq.f32.partialorder %v67, 8.507059e+37
    %v69 = vand.u32 %v39, 2147483648
    %v70 = vor.u32 1.1754944e-38, %v69
    %v71 = vsel %vm68, %v70, %v66
    %v72 = vmul.f32 %v53, %v71
    %v73 = vsub.f32 1.0, %v72
    %v74 = vmax.f32 %v73, 0.0
    %v75 = vmul.f32 %v74, %v74
    %v76 = vmul.f32 %v75, %v57
    %v77 = vsel %vm25, %v76, 0.0
    %v78 = vld [vmem:[#allocation2] sm:$0x1]
    %v79 = vrot.slane %v77, 4
    %v80 = vadd.f32 %v77, %v79
    %v81 = vrot.slane %v80, 2
    %v82 = vadd.f32 %v80, %v81
    %v83 = vrot.slane %v82, 1
    %v84 = vadd.f32 %v82, %v83
    %v85 = vadd.f32 %v78, %v84
    %vm86 = vcmask 0
    %87 = vst.msk [vmem:[#allocation2] sm:$0x1] %vm86, %v85
    // Predicated region
    $region14: #{tpu_custom_call.1} parent=1 // pred_check
      %p88 = pneg %p12
    $region15: #{tpu_custom_call.1} parent=1 // pred_check_branch
      %90 = sbr.rel (%p88) target = $region17
    $region16: #{tpu_custom_call.1} parent=1 // pred_region
      %v91 = vld [vmem:[#allocation2] sm:$0x1]
      %v92 = vmul.f32 %v91, 0.125
      %93 = vst.msk [vmem:[#allocation3] sm:$0x1] %vm86, %v92
    $region17: #{tpu_custom_call.1} parent=1 // pred_fallthru
      _
    // Predicated region
    $region18: #{tpu_custom_call.1} parent=1 // pred_check
      _
    $region19: #{tpu_custom_call.1} parent=1 // pred_check_branch
      %95 = sbr.rel (0) target = $region21
    $region20: #{tpu_custom_call.1} parent=1 // pred_region
      %97 = vsyncadd [#allocation4], 0
      %s99 = sshll.u32 [#allocation3], 4
      %s100 = int_to_ptr.vmem [resolvable:$true] %s99
      %s101 = sshll.u32 %s2, 4
      %s102 = int_to_ptr.hbm [resolvable:$true] %s101
      %104 = dma.vmem_to_hbm [thread:$0]  %s100, 16, %s102, [#allocation4]
    $region21: #{tpu_custom_call.1} parent=1 // pred_fallthru
      _
    // Predicated region
    $region22: #{tpu_custom_call.1} parent=1 // pred_check
      _
    $region23: #{tpu_custom_call.1} parent=1 // pred_check_branch
      %106 = sbr.rel (0) target = $region25
    $region24: #{tpu_custom_call.1} parent=1 // pred_region
      %108 = dma.done [#allocation4], 16
    $region25: #{tpu_custom_call.1} parent=1 // pred_fallthru
      _
    %109 = vsyncpa [#allocation4], 1

</llo_original>
